<compile_context>
chip_gen: v5e
topology: v5e:2x2
jax: 0.10.0
libtpu: 0.0.40
codegen_flags: <defaults>
</compile_context>

<pallas_src>
import math

import jax
import jax.numpy as jnp
from jax import lax
from jax.experimental import pallas as pl
from jax.experimental.pallas import tpu as pltpu

SCALE_FACTOR = 1.0 / math.sqrt(8.0)   # torch module: .div(1/sqrt(8))
INV_SCALE = 1.0 / SCALE_FACTOR        # == sqrt(8)

# dot_general dims: contract q's last dim with k's last dim -> q @ k^T (no
# materialized transpose; folds into the MXU operand fetch).
_QKT_DIMS = (((1,), (1,)), ((), ()))


def _sdp_kernel_gridless(q_ref, k_ref, v_ref, o_ref):
    """Single program; full (G, S, D) operands resident in VMEM.

    Static unroll over heads -> three pairs of explicit 2-D matmuls,
    no batched dot_general (avoids any relayout/copy around a batch-3 dot).
    """
    G = q_ref.shape[0]
    for g in range(G):  # static Python unroll (G == 3)
        qg = q_ref[g]   # (S, D) f32
        kg = k_ref[g]
        vg = v_ref[g]
        s = lax.dot_general(qg, kg, _QKT_DIMS,
                            preferred_element_type=jnp.float32)   # q @ k^T
        out = jnp.dot(s, vg, preferred_element_type=jnp.float32)  # scores @ v
        o_ref[g] = (out * INV_SCALE).astype(o_ref.dtype)


def _sdp_kernel_per_head(q_ref, k_ref, v_ref, o_ref):
    """One head per grid step; block is (1, S, D). Used on v7x so the heads
    shard across the two TensorCores ("parallel" grid axis)."""
    qg = q_ref[0]   # (S, D) f32
    kg = k_ref[0]
    vg = v_ref[0]
    s = lax.dot_general(qg, kg, _QKT_DIMS,
                        preferred_element_type=jnp.float32)   # q @ k^T
    out = jnp.dot(s, vg, preferred_element_type=jnp.float32)  # scores @ v
    o_ref[0] = (out * INV_SCALE).astype(o_ref.dtype)


def _has_multiple_tensorcores():
    """True on v7x-class chips (2 TCs/chip); False (or on any failure) otherwise."""
    try:
        kind = jax.devices()[0].device_kind.lower()
    except Exception:
        return False
    return "v7" in kind


def sdp_pallas(q, k, v):
    """q, k, v: (B, H, S, D) float32. Returns (B, H, S, D)."""
    B, H, S, D = q.shape
    G = B * H
    qf = q.reshape(G, S, D)
    kf = k.reshape(G, S, D)
    vf = v.reshape(G, S, D)

    # Advisory cost estimate: 2 matmuls x 2*S*S*D flops per head; 3 inputs + 1
    # output of G*S*D f32 each; no transcendentals.
    cost = pl.CostEstimate(
        flops=4 * G * S * S * D,
        bytes_accessed=4 * G * S * D * q.dtype.itemsize,
        transcendentals=0,
    )

    if _has_multiple_tensorcores():
        # v7x: tiny parallel grid over heads so both TensorCores get work.
        out = pl.pallas_call(
            _sdp_kernel_per_head,
            out_shape=jax.ShapeDtypeStruct((G, S, D), q.dtype),
            grid=(G,),
            in_specs=[pl.BlockSpec((1, S, D), lambda g: (g, 0, 0))] * 3,
            out_specs=pl.BlockSpec((1, S, D), lambda g: (g, 0, 0)),
            compiler_params=pltpu.CompilerParams(
                dimension_semantics=("parallel",)),
            cost_estimate=cost,
        )(qf, kf, vf)
    else:
        # v5e / v6e: single TC -> grid-less full residency, one DMA per operand.
        out = pl.pallas_call(
            _sdp_kernel_gridless,
            out_shape=jax.ShapeDtypeStruct((G, S, D), q.dtype),
            in_specs=[pl.BlockSpec(memory_space=pltpu.MemorySpace.VMEM)] * 3,
            out_specs=pl.BlockSpec(memory_space=pltpu.MemorySpace.VMEM),
            cost_estimate=cost,
        )(qf, kf, vf)

    return out.reshape(B, H, S, D)


def sdp_reference(q, k, v):
    s = jnp.matmul(q, jnp.swapaxes(k, -2, -1))
    return jnp.matmul(s, v) / SCALE_FACTOR


if __name__ == "__main__":
    key = jax.random.PRNGKey(0)
    kq, kk, kv = jax.random.split(key, 3)
    shape = (1, 3, 64, 64)
    q = jax.random.normal(kq, shape, dtype=jnp.float32)
    k = jax.random.normal(kk, shape, dtype=jnp.float32)
    v = jax.random.normal(kv, shape, dtype=jnp.float32)

    out = jax.block_until_ready(sdp_pallas(q, k, v))
    ref = jax.block_until_ready(sdp_reference(q, k, v))

    assert out.shape == shape, out.shape
    assert jnp.allclose(out, ref, atol=1e-3, rtol=1e-3), "mismatch vs reference"
    print("KERNEL_OK")
</pallas_src>

<mosaic_0001>
module attributes {stable_mosaic.version = 11 : i64} {
  func.func @_sdp_kernel_gridless(%arg0: memref<3x64x64xf32, #tpu.memory_space<vmem>>, %arg1: memref<3x64x64xf32, #tpu.memory_space<vmem>>, %arg2: memref<3x64x64xf32, #tpu.memory_space<vmem>>, %arg3: memref<3x64x64xf32, #tpu.memory_space<vmem>>) attributes {dimension_semantics = [], scalar_prefetch = 0 : i64, scratch_operands = 0 : i64, tpu.core_type = #tpu.core_type<tc>} {
    %c0 = arith.constant 0 : index
    %c0_0 = arith.constant 0 : index
    %c0_1 = arith.constant 0 : index
    %0 = vector.load %arg0[%c0, %c0_0, %c0_1] : memref<3x64x64xf32, #tpu.memory_space<vmem>>, vector<1x64x64xf32>
    %1 = vector.shape_cast %0 : vector<1x64x64xf32> to vector<64x64xf32>
    %c0_2 = arith.constant 0 : index
    %c0_3 = arith.constant 0 : index
    %c0_4 = arith.constant 0 : index
    %2 = vector.load %arg1[%c0_2, %c0_3, %c0_4] : memref<3x64x64xf32, #tpu.memory_space<vmem>>, vector<1x64x64xf32>
    %3 = vector.shape_cast %2 : vector<1x64x64xf32> to vector<64x64xf32>
    %c0_5 = arith.constant 0 : index
    %c0_6 = arith.constant 0 : index
    %c0_7 = arith.constant 0 : index
    %4 = vector.load %arg2[%c0_5, %c0_6, %c0_7] : memref<3x64x64xf32, #tpu.memory_space<vmem>>, vector<1x64x64xf32>
    %5 = vector.shape_cast %4 : vector<1x64x64xf32> to vector<64x64xf32>
    %cst = arith.constant dense<0.000000e+00> : vector<64x64xf32>
    %6 = tpu.matmul %1, %3, %cst {dimension_numbers = #tpu.dot_dimension_numbers<[1], [1], [0], [0], [0, 0, 1, 0], [], []>} : vector<64x64xf32>, vector<64x64xf32>, vector<64x64xf32> -> vector<64x64xf32>
    %cst_8 = arith.constant dense<0.000000e+00> : vector<64x64xf32>
    %7 = tpu.matmul %6, %5, %cst_8 {dimension_numbers = #tpu.dot_dimension_numbers<[1], [0], [0], [1], [0, 0, 1, 1], [], []>} : vector<64x64xf32>, vector<64x64xf32>, vector<64x64xf32> -> vector<64x64xf32>
    %cst_9 = arith.constant 2.82842708 : f32
    %8 = vector.broadcast %cst_9 : f32 to vector<64x64xf32>
    %9 = arith.mulf %7, %8 : vector<64x64xf32>
    %c0_10 = arith.constant 0 : index
    %c0_11 = arith.constant 0 : index
    %c0_12 = arith.constant 0 : index
    %10 = vector.load %arg3[%c0_10, %c0_11, %c0_12] : memref<3x64x64xf32, #tpu.memory_space<vmem>>, vector<1x64x64xf32>
    %11 = vector.shape_cast %10 : vector<1x64x64xf32> to vector<64x64xf32>
    %12 = vector.shape_cast %9 : vector<64x64xf32> to vector<1x64x64xf32>
    tpu.vector_store %arg3[%c0_10, %c0_11, %c0_12], %12 {strides = array<i32>} : memref<3x64x64xf32, #tpu.memory_space<vmem>>, vector<1x64x64xf32>,
    %c1 = arith.constant 1 : index
    %c0_13 = arith.constant 0 : index
    %c0_14 = arith.constant 0 : index
    %13 = vector.load %arg0[%c1, %c0_13, %c0_14] : memref<3x64x64xf32, #tpu.memory_space<vmem>>, vector<1x64x64xf32>
    %14 = vector.shape_cast %13 : vector<1x64x64xf32> to vector<64x64xf32>
    %c1_15 = arith.constant 1 : index
    %c0_16 = arith.constant 0 : index
    %c0_17 = arith.constant 0 : index
    %15 = vector.load %arg1[%c1_15, %c0_16, %c0_17] : memref<3x64x64xf32, #tpu.memory_space<vmem>>, vector<1x64x64xf32>
    %16 = vector.shape_cast %15 : vector<1x64x64xf32> to vector<64x64xf32>
    %c1_18 = arith.constant 1 : index
    %c0_19 = arith.constant 0 : index
    %c0_20 = arith.constant 0 : index
    %17 = vector.load %arg2[%c1_18, %c0_19, %c0_20] : memref<3x64x64xf32, #tpu.memory_space<vmem>>, vector<1x64x64xf32>
    %18 = vector.shape_cast %17 : vector<1x64x64xf32> to vector<64x64xf32>
    %cst_21 = arith.constant dense<0.000000e+00> : vector<64x64xf32>
    %19 = tpu.matmul %14, %16, %cst_21 {dimension_numbers = #tpu.dot_dimension_numbers<[1], [1], [0], [0], [0, 0, 1, 0], [], []>} : vector<64x64xf32>, vector<64x64xf32>, vector<64x64xf32> -> vector<64x64xf32>
    %cst_22 = arith.constant dense<0.000000e+00> : vector<64x64xf32>
    %20 = tpu.matmul %19, %18, %cst_22 {dimension_numbers = #tpu.dot_dimension_numbers<[1], [0], [0], [1], [0, 0, 1, 1], [], []>} : vector<64x64xf32>, vector<64x64xf32>, vector<64x64xf32> -> vector<64x64xf32>
    %cst_23 = arith.constant 2.82842708 : f32
    %21 = vector.broadcast %cst_23 : f32 to vector<64x64xf32>
    %22 = arith.mulf %20, %21 : vector<64x64xf32>
    %c1_24 = arith.constant 1 : index
    %c0_25 = arith.constant 0 : index
    %c0_26 = arith.constant 0 : index
    %23 = vector.load %arg3[%c1_24, %c0_25, %c0_26] : memref<3x64x64xf32, #tpu.memory_space<vmem>>, vector<1x64x64xf32>
    %24 = vector.shape_cast %23 : vector<1x64x64xf32> to vector<64x64xf32>
    %25 = vector.shape_cast %22 : vector<64x64xf32> to vector<1x64x64xf32>
    tpu.vector_store %arg3[%c1_24, %c0_25, %c0_26], %25 {strides = array<i32>} : memref<3x64x64xf32, #tpu.memory_space<vmem>>, vector<1x64x64xf32>,
    %c2 = arith.constant 2 : index
    %c0_27 = arith.constant 0 : index
    %c0_28 = arith.constant 0 : index
    %26 = vector.load %arg0[%c2, %c0_27, %c0_28] : memref<3x64x64xf32, #tpu.memory_space<vmem>>, vector<1x64x64xf32>
    %27 = vector.shape_cast %26 : vector<1x64x64xf32> to vector<64x64xf32>
    %c2_29 = arith.constant 2 : index
    %c0_30 = arith.constant 0 : index
    %c0_31 = arith.constant 0 : index
    %28 = vector.load %arg1[%c2_29, %c0_30, %c0_31] : memref<3x64x64xf32, #tpu.memory_space<vmem>>, vector<1x64x64xf32>
    %29 = vector.shape_cast %28 : vector<1x64x64xf32> to vector<64x64xf32>
    %c2_32 = arith.constant 2 : index
    %c0_33 = arith.constant 0 : index
    %c0_34 = arith.constant 0 : index
    %30 = vector.load %arg2[%c2_32, %c0_33, %c0_34] : memref<3x64x64xf32, #tpu.memory_space<vmem>>, vector<1x64x64xf32>
    %31 = vector.shape_cast %30 : vector<1x64x64xf32> to vector<64x64xf32>
    %cst_35 = arith.constant dense<0.000000e+00> : vector<64x64xf32>
    %32 = tpu.matmul %27, %29, %cst_35 {dimension_numbers = #tpu.dot_dimension_numbers<[1], [1], [0], [0], [0, 0, 1, 0], [], []>} : vector<64x64xf32>, vector<64x64xf32>, vector<64x64xf32> -> vector<64x64xf32>
    %cst_36 = arith.constant dense<0.000000e+00> : vector<64x64xf32>
    %33 = tpu.matmul %32, %31, %cst_36 {dimension_numbers = #tpu.dot_dimension_numbers<[1], [0], [0], [1], [0, 0, 1, 1], [], []>} : vector<64x64xf32>, vector<64x64xf32>, vector<64x64xf32> -> vector<64x64xf32>
    %cst_37 = arith.constant 2.82842708 : f32
    %34 = vector.broadcast %cst_37 : f32 to vector<64x64xf32>
    %35 = arith.mulf %33, %34 : vector<64x64xf32>
    %c2_38 = arith.constant 2 : index
    %c0_39 = arith.constant 0 : index
    %c0_40 = arith.constant 0 : index
    %36 = vector.load %arg3[%c2_38, %c0_39, %c0_40] : memref<3x64x64xf32, #tpu.memory_space<vmem>>, vector<1x64x64xf32>
    %37 = vector.shape_cast %36 : vector<1x64x64xf32> to vector<64x64xf32>
    %38 = vector.shape_cast %35 : vector<64x64xf32> to vector<1x64x64xf32>
    tpu.vector_store %arg3[%c2_38, %c0_39, %c0_40], %38 {strides = array<i32>} : memref<3x64x64xf32, #tpu.memory_space<vmem>>, vector<1x64x64xf32>,
    return
  }
}

</mosaic_0001>

<llo_original>
// kernel: tpu_custom_call.1
$region0: #{tpu_custom_call.1}
  #allocation0 [shape = 'u32[]', space=smem, size = 0x4, offset = 0x4, fixed_abs, tag = 'smem constant byte address 0x4 - core index']
  #allocation1 [shape = 'u32[72,128]{1,0:T(1,128)}', space=vmem, size = 0x9000, scoped, tag = 'internal scratch']
  %s0 = inlined_call_operand.hbm [shape: f32[3,64,64], index: 0, kind: input, shape index: {}]
  %s1 = inlined_call_operand.hbm [shape: f32[3,64,64], index: 1, kind: input, shape index: {}]
  %s2 = inlined_call_operand.hbm [shape: f32[3,64,64], index: 2, kind: input, shape index: {}]
  %s3 = inlined_call_operand.hbm [shape: f32[3,64,64], index: 3, kind: output, shape index: {}]
  %s4 = sld [smem:[#allocation0]]
  $region34: #{tpu_custom_call.1} parent=0
    _
  %s6 = ssub.s32 1, %s4
  %s7 = scalar_select 0, %s6, %s4
  $region1: #{tpu_custom_call.1} parent=0
    #allocation2 [shape = 'u8[98304]{0}', space=vmem, size = 0x18000, scoped, tag = 'input window, operand 0, single buffered']
    #allocation3 [shape = 's32[1]{0}', space=sflag, size = 0x4, scoped, tag = 'scoped memory for tpu_custom_call.1']
    #allocation4 [shape = 's32[1]{0}', space=sflag, size = 0x4, scoped, tag = 'scoped memory for tpu_custom_call.1']
    #allocation5 [shape = 'u8[98304]{0}', space=vmem, size = 0x18000, scoped, tag = 'input window, operand 1, single buffered']
    #allocation6 [shape = 's32[1]{0}', space=sflag, size = 0x4, scoped, tag = 'scoped memory for tpu_custom_call.1']
    #allocation7 [shape = 'u8[98304]{0}', space=vmem, size = 0x18000, scoped, tag = 'input window, operand 2, single buffered']
    #allocation8 [shape = 'u8[98304]{0}', space=vmem, size = 0x18000, scoped, tag = 'output window, operand 0, single buffered']
    %8 = vsyncpa [#allocation3], 0
    %9 = vsyncpa [#allocation6], 0
    %10 = vsyncpa [#allocation4], 0
    // Predicated region
    $region2: #{tpu_custom_call.1} parent=1 // pred_check
      _
    $region3: #{tpu_custom_call.1} parent=1 // pred_check_branch
      %12 = sbr.rel (0) target = $region5
    $region4: #{tpu_custom_call.1} parent=1 // pred_region
      %14 = vsyncadd [#allocation3], 0
      %s15 = sshll.u32 %s0, 4
      %s16 = int_to_ptr.hbm [resolvable:$true] %s15
      %s17 = sshll.u32 [#allocation2], 4
      %s18 = int_to_ptr.vmem [resolvable:$true] %s17
      %23 = dma.hbm_to_vmem [thread:$0]  %s16, 3072, %s18, [#allocation3], 128, 128, 8
    $region5: #{tpu_custom_call.1} parent=1 // pred_fallthru
      _
    // Predicated region
    $region6: #{tpu_custom_call.1} parent=1 // pred_check
      _
    $region7: #{tpu_custom_call.1} parent=1 // pred_check_branch
      %25 = sbr.rel (0) target = $region9
    $region8: #{tpu_custom_call.1} parent=1 // pred_region
      %27 = vsyncadd [#allocation6], 0
      %s28 = sshll.u32 %s1, 4
      %s29 = int_to_ptr.hbm [resolvable:$true] %s28
      %s30 = sshll.u32 [#allocation5], 4
      %s31 = int_to_ptr.vmem [resolvable:$true] %s30
      %36 = dma.hbm_to_vmem [thread:$0]  %s29, 3072, %s31, [#allocation6], 128, 128, 8
    $region9: #{tpu_custom_call.1} parent=1 // pred_fallthru
      _
    // Predicated region
    $region10: #{tpu_custom_call.1} parent=1 // pred_check
      _
    $region11: #{tpu_custom_call.1} parent=1 // pred_check_branch
      %38 = sbr.rel (0) target = $region13
    $region12: #{tpu_custom_call.1} parent=1 // pred_region
      %40 = vsyncadd [#allocation6], 0
      %s41 = sshll.u32 %s2, 4
      %s42 = int_to_ptr.hbm [resolvable:$true] %s41
      %s43 = sshll.u32 [#allocation7], 4
      %s44 = int_to_ptr.vmem [resolvable:$true] %s43
      %49 = dma.hbm_to_vmem [thread:$0]  %s42, 3072, %s44, [#allocation6], 128, 128, 8
    $region13: #{tpu_custom_call.1} parent=1 // pred_fallthru
      _
    // Predicated region
    $region14: #{tpu_custom_call.1} parent=1 // pred_check
      _
    $region15: #{tpu_custom_call.1} parent=1 // pred_check_branch
      %51 = sbr.rel (0) target = $region17
    $region16: #{tpu_custom_call.1} parent=1 // pred_region
      %53 = dma.done [#allocation3], 3072
    $region17: #{tpu_custom_call.1} parent=1 // pred_fallthru
      _
    // Predicated region
    $region18: #{tpu_custom_call.1} parent=1 // pred_check
      _
    $region19: #{tpu_custom_call.1} parent=1 // pred_check_branch
      %55 = sbr.rel (0) target = $region21
    $region20: #{tpu_custom_call.1} parent=1 // pred_region
      %57 = dma.done [#allocation6], 3072
    $region21: #{tpu_custom_call.1} parent=1 // pred_fallthru
      _
    // Predicated region
    $region22: #{tpu_custom_call.1} parent=1 // pred_check
      _
    $region23: #{tpu_custom_call.1} parent=1 // pred_check_branch
      %59 = sbr.rel (0) target = $region25
    $region24: #{tpu_custom_call.1} parent=1 // pred_region
      %61 = dma.done [#allocation6], 3072
    $region25: #{tpu_custom_call.1} parent=1 // pred_fallthru
      _
    %v62 = vld [vmem:[#allocation2] sm:$0xff]
    %v63 = vld [vmem:[#allocation2 + $0x8] sm:$0xff]
    %v64 = vld [vmem:[#allocation2 + $0x10] sm:$0xff]
    %v65 = vld [vmem:[#allocation2 + $0x18] sm:$0xff]
    %v66 = vld [vmem:[#allocation2 + $0x20] sm:$0xff]
    %v67 = vld [vmem:[#allocation2 + $0x28] sm:$0xff]
    %v68 = vld [vmem:[#allocation2 + $0x30] sm:$0xff]
    %v69 = vld [vmem:[#allocation2 + $0x38] sm:$0xff]
    %v70 = vld [vmem:[#allocation5] sm:$0xff]
    %v71 = vld [vmem:[#allocation5 + $0x8] sm:$0xff]
    %v72 = vld [vmem:[#allocation5 + $0x10] sm:$0xff]
    %v73 = vld [vmem:[#allocation5 + $0x18] sm:$0xff]
    %v74 = vld [vmem:[#allocation5 + $0x20] sm:$0xff]
    %v75 = vld [vmem:[#allocation5 + $0x28] sm:$0xff]
    %v76 = vld [vmem:[#allocation5 + $0x30] sm:$0xff]
    %v77 = vld [vmem:[#allocation5 + $0x38] sm:$0xff]
    %v78 = vld [vmem:[#allocation7] sm:$0xff]
    %v79 = vld [vmem:[#allocation7 + $0x8] sm:$0xff]
    %v80 = vld [vmem:[#allocation7 + $0x10] sm:$0xff]
    %v81 = vld [vmem:[#allocation7 + $0x18] sm:$0xff]
    %v82 = vld [vmem:[#allocation7 + $0x20] sm:$0xff]
    %v83 = vld [vmem:[#allocation7 + $0x28] sm:$0xff]
    %v84 = vld [vmem:[#allocation7 + $0x30] sm:$0xff]
    %v85 = vld [vmem:[#allocation7 + $0x38] sm:$0xff]
    %vm86 = vcmask 523264
    %v88 = vsel %vm86, %v62, 0
    %v91 = vsel %vm86, %v63, 0
    %v94 = vsel %vm86, %v64, 0
    %v97 = vsel %vm86, %v65, 0
    %v100 = vsel %vm86, %v66, 0
    %v103 = vsel %vm86, %v67, 0
    %v106 = vsel %vm86, %v68, 0
    %v109 = vsel %vm86, %v69, 0
    %v112 = vsel %vm86, %v70, 0
    %v115 = vsel %vm86, %v71, 0
    %v118 = vsel %vm86, %v72, 0
    %v121 = vsel %vm86, %v73, 0
    %v124 = vsel %vm86, %v74, 0
    %v127 = vsel %vm86, %v75, 0
    %v130 = vsel %vm86, %v76, 0
    %v133 = vsel %vm86, %v77, 0
    %135 = vmatpush.xpose.msra.mxu0 0.0
    %136 = vmatpush.xpose.msra.mxu0 0.0
    %137 = vmatpush.xpose.msra.mxu0 0.0
    %138 = vmatpush.xpose.msra.mxu0 0.0
    %139 = vmatpush.xpose.msra.mxu0 0.0
    %140 = vmatpush.xpose.msra.mxu0 0.0
    %141 = vmatpush.xpose.msra.mxu0 0.0
    %142 = vmatpush.xpose.msra.mxu0 0.0
    %143 = vmatpush.xpose.msra.mxu0 %v133
    %144 = vmatpush.xpose.msra.mxu0 %v130
    %145 = vmatpush.xpose.msra.mxu0 %v127
    %146 = vmatpush.xpose.msra.mxu0 %v124
    %147 = vmatpush.xpose.msra.mxu0 %v121
    %148 = vmatpush.xpose.msra.mxu0 %v118
    %149 = vmatpush.xpose.msra.mxu0 %v115
    %150 = vmatpush.xpose.msra.mxu0 %v112
    %151 = vmatmul.f32.gmra.mxu0 %v88
    %v152 = vpop.f32.mrf.mxu0
    %v153 = vadd.f32 0.0, %v152
    %154 = vmatmul.f32.gmra.mxu0 %v91
    %v155 = vpop.f32.mrf.mxu0
    %v156 = vadd.f32 0.0, %v155
    %157 = vmatmul.f32.gmra.mxu0 %v94
    %v158 = vpop.f32.mrf.mxu0
    %v159 = vadd.f32 0.0, %v158
    %160 = vmatmul.f32.gmra.mxu0 %v97
    %v161 = vpop.f32.mrf.mxu0
    %v162 = vadd.f32 0.0, %v161
    %163 = vmatmul.f32.gmra.mxu0 %v100
    %v164 = vpop.f32.mrf.mxu0
    %v165 = vadd.f32 0.0, %v164
    %166 = vmatmul.f32.gmra.mxu0 %v103
    %v167 = vpop.f32.mrf.mxu0
    %v168 = vadd.f32 0.0, %v167
    %169 = vmatmul.f32.gmra.mxu0 %v106
    %v170 = vpop.f32.mrf.mxu0
    %v171 = vadd.f32 0.0, %v170
    %172 = vmatmul.f32.gmra.mxu0 %v109
    %v173 = vpop.f32.mrf.mxu0
    %v174 = vadd.f32 0.0, %v173
    %175 = vdwg.mxu0
    %v177 = vsel %vm86, %v153, 0
    %v180 = vsel %vm86, %v156, 0
    %v183 = vsel %vm86, %v159, 0
    %v186 = vsel %vm86, %v162, 0
    %v189 = vsel %vm86, %v165, 0
    %v192 = vsel %vm86, %v168, 0
    %v195 = vsel %vm86, %v171, 0
    %v198 = vsel %vm86, %v174, 0
    %200 = vmatpush.msra.mxu0 0.0
    %201 = vmatpush.msra.mxu0 0.0
    %202 = vmatpush.msra.mxu0 0.0
    %203 = vmatpush.msra.mxu0 0.0
    %204 = vmatpush.msra.mxu0 0.0
    %205 = vmatpush.msra.mxu0 0.0
    %206 = vmatpush.msra.mxu0 0.0
    %207 = vmatpush.msra.mxu0 0.0
    %208 = vmatpush.msra.mxu0 %v85
    %209 = vmatpush.msra.mxu0 %v84
    %210 = vmatpush.msra.mxu0 %v83
    %211 = vmatpush.msra.mxu0 %v82
    %212 = vmatpush.msra.mxu0 %v81
    %213 = vmatpush.msra.mxu0 %v80
    %214 = vmatpush.msra.mxu0 %v79
    %215 = vmatpush.msra.mxu0 %v78
    %216 = vmatmul.f32.gmra.mxu0 %v177
    %v217 = vpop.f32.mrf.mxu0
    %v218 = vadd.f32 0.0, %v217
    %219 = vmatmul.f32.gmra.mxu0 %v180
    %v220 = vpop.f32.mrf.mxu0
    %v221 = vadd.f32 0.0, %v220
    %222 = vmatmul.f32.gmra.mxu0 %v183
    %v223 = vpop.f32.mrf.mxu0
    %v224 = vadd.f32 0.0, %v223
    %225 = vmatmul.f32.gmra.mxu0 %v186
    %v226 = vpop.f32.mrf.mxu0
    %v227 = vadd.f32 0.0, %v226
    %228 = vmatmul.f32.gmra.mxu0 %v189
    %v229 = vpop.f32.mrf.mxu0
    %v230 = vadd.f32 0.0, %v229
    %231 = vmatmul.f32.gmra.mxu0 %v192
    %v232 = vpop.f32.mrf.mxu0
    %v233 = vadd.f32 0.0, %v232
    %234 = vmatmul.f32.gmra.mxu0 %v195
    %v235 = vpop.f32.mrf.mxu0
    %v236 = vadd.f32 0.0, %v235
    %237 = vmatmul.f32.gmra.mxu0 %v198
    %v238 = vpop.f32.mrf.mxu0
    %v239 = vadd.f32 0.0, %v238
    %240 = vdwg.mxu0
    %v241 = vmul.f32 %v218, 2.828427
    %v242 = vmul.f32 %v221, 2.828427
    %v243 = vmul.f32 %v224, 2.828427
    %v244 = vmul.f32 %v227, 2.828427
    %v245 = vmul.f32 %v230, 2.828427
    %v246 = vmul.f32 %v233, 2.828427
    %v247 = vmul.f32 %v236, 2.828427
    %v248 = vmul.f32 %v239, 2.828427
    %249 = vst.msk [vmem:[#allocation8] sm:$0xff] %vm86, %v241
    %250 = vst.msk [vmem:[#allocation8 + $0x8] sm:$0xff] %vm86, %v242
    %251 = vst.msk [vmem:[#allocation8 + $0x10] sm:$0xff] %vm86, %v243
    %252 = vst.msk [vmem:[#allocation8 + $0x18] sm:$0xff] %vm86, %v244
    %253 = vst.msk [vmem:[#allocation8 + $0x20] sm:$0xff] %vm86, %v245
    %254 = vst.msk [vmem:[#allocation8 + $0x28] sm:$0xff] %vm86, %v246
    %255 = vst.msk [vmem:[#allocation8 + $0x30] sm:$0xff] %vm86, %v247
    %256 = vst.msk [vmem:[#allocation8 + $0x38] sm:$0xff] %vm86, %v248
    %s257 = scalar_lea.vmem [#allocation2], 64
    %v258 = vld [vmem:[%s257] sm:$0xff]
    %v259 = vld [vmem:[%s257 + $0x8] sm:$0xff]
    %v260 = vld [vmem:[%s257 + $0x10] sm:$0xff]
    %v261 = vld [vmem:[%s257 + $0x18] sm:$0xff]
    %v262 = vld [vmem:[%s257 + $0x20] sm:$0xff]
    %v263 = vld [vmem:[%s257 + $0x28] sm:$0xff]
    %v264 = vld [vmem:[%s257 + $0x30] sm:$0xff]
    %v265 = vld [vmem:[%s257 + $0x38] sm:$0xff]
    %s266 = scalar_lea.vmem [#allocation5], 64
    %v267 = vld [vmem:[%s266] sm:$0xff]
    %v268 = vld [vmem:[%s266 + $0x8] sm:$0xff]
    %v269 = vld [vmem:[%s266 + $0x10] sm:$0xff]
    %v270 = vld [vmem:[%s266 + $0x18] sm:$0xff]
    %v271 = vld [vmem:[%s266 + $0x20] sm:$0xff]
    %v272 = vld [vmem:[%s266 + $0x28] sm:$0xff]
    %v273 = vld [vmem:[%s266 + $0x30] sm:$0xff]
    %v274 = vld [vmem:[%s266 + $0x38] sm:$0xff]
    %s275 = scalar_lea.vmem [#allocation7], 64
    %v276 = vld [vmem:[%s275] sm:$0xff]
    %v277 = vld [vmem:[%s275 + $0x8] sm:$0xff]
    %v278 = vld [vmem:[%s275 + $0x10] sm:$0xff]
    %v279 = vld [vmem:[%s275 + $0x18] sm:$0xff]
    %v280 = vld [vmem:[%s275 + $0x20] sm:$0xff]
    %v281 = vld [vmem:[%s275 + $0x28] sm:$0xff]
    %v282 = vld [vmem:[%s275 + $0x30] sm:$0xff]
    %v283 = vld [vmem:[%s275 + $0x38] sm:$0xff]
    %v285 = vsel %vm86, %v258, 0
    %v288 = vsel %vm86, %v259, 0
    %v291 = vsel %vm86, %v260, 0
    %v294 = vsel %vm86, %v261, 0
    %v297 = vsel %vm86, %v262, 0
    %v300 = vsel %vm86, %v263, 0
    %v303 = vsel %vm86, %v264, 0
    %v306 = vsel %vm86, %v265, 0
    %v309 = vsel %vm86, %v267, 0
    %v312 = vsel %vm86, %v268, 0
    %v315 = vsel %vm86, %v269, 0
    %v318 = vsel %vm86, %v270, 0
    %v321 = vsel %vm86, %v271, 0
    %v324 = vsel %vm86, %v272, 0
    %v327 = vsel %vm86, %v273, 0
    %v330 = vsel %vm86, %v274, 0
    %332 = vmatpush.xpose.msra.mxu0 0.0
    %333 = vmatpush.xpose.msra.mxu0 0.0
    %334 = vmatpush.xpose.msra.mxu0 0.0
    %335 = vmatpush.xpose.msra.mxu0 0.0
    %336 = vmatpush.xpose.msra.mxu0 0.0
    %337 = vmatpush.xpose.msra.mxu0 0.0
    %338 = vmatpush.xpose.msra.mxu0 0.0
    %339 = vmatpush.xpose.msra.mxu0 0.0
    %340 = vmatpush.xpose.msra.mxu0 %v330
    %341 = vmatpush.xpose.msra.mxu0 %v327
    %342 = vmatpush.xpose.msra.mxu0 %v324
    %343 = vmatpush.xpose.msra.mxu0 %v321
    %344 = vmatpush.xpose.msra.mxu0 %v318
    %345 = vmatpush.xpose.msra.mxu0 %v315
    %346 = vmatpush.xpose.msra.mxu0 %v312
    %347 = vmatpush.xpose.msra.mxu0 %v309
    %348 = vmatmul.f32.gmra.mxu0 %v285
    %v349 = vpop.f32.mrf.mxu0
    %v350 = vadd.f32 0.0, %v349
    %351 = vmatmul.f32.gmra.mxu0 %v288
    %v352 = vpop.f32.mrf.mxu0
    %v353 = vadd.f32 0.0, %v352
    %354 = vmatmul.f32.gmra.mxu0 %v291
    %v355 = vpop.f32.mrf.mxu0
    %v356 = vadd.f32 0.0, %v355
    %357 = vmatmul.f32.gmra.mxu0 %v294
    %v358 = vpop.f32.mrf.mxu0
    %v359 = vadd.f32 0.0, %v358
    %360 = vmatmul.f32.gmra.mxu0 %v297
    %v361 = vpop.f32.mrf.mxu0
    %v362 = vadd.f32 0.0, %v361
    %363 = vmatmul.f32.gmra.mxu0 %v300
    %v364 = vpop.f32.mrf.mxu0
    %v365 = vadd.f32 0.0, %v364
    %366 = vmatmul.f32.gmra.mxu0 %v303
    %v367 = vpop.f32.mrf.mxu0
    %v368 = vadd.f32 0.0, %v367
    %369 = vmatmul.f32.gmra.mxu0 %v306
    %v370 = vpop.f32.mrf.mxu0
    %v371 = vadd.f32 0.0, %v370
    %372 = vdwg.mxu0
    %v374 = vsel %vm86, %v350, 0
    %v377 = vsel %vm86, %v353, 0
    %v380 = vsel %vm86, %v356, 0
    %v383 = vsel %vm86, %v359, 0
    %v386 = vsel %vm86, %v362, 0
    %v389 = vsel %vm86, %v365, 0
    %v392 = vsel %vm86, %v368, 0
    %v395 = vsel %vm86, %v371, 0
    %397 = vmatpush.msra.mxu0 0.0
    %398 = vmatpush.msra.mxu0 0.0
    %399 = vmatpush.msra.mxu0 0.0
    %400 = vmatpush.msra.mxu0 0.0
    %401 = vmatpush.msra.mxu0 0.0
    %402 = vmatpush.msra.mxu0 0.0
    %403 = vmatpush.msra.mxu0 0.0
    %404 = vmatpush.msra.mxu0 0.0
    %405 = vmatpush.msra.mxu0 %v283
    %406 = vmatpush.msra.mxu0 %v282
    %407 = vmatpush.msra.mxu0 %v281
    %408 = vmatpush.msra.mxu0 %v280
    %409 = vmatpush.msra.mxu0 %v279
    %410 = vmatpush.msra.mxu0 %v278
    %411 = vmatpush.msra.mxu0 %v277
    %412 = vmatpush.msra.mxu0 %v276
    %413 = vmatmul.f32.gmra.mxu0 %v374
    %v414 = vpop.f32.mrf.mxu0
    %v415 = vadd.f32 0.0, %v414
    %416 = vmatmul.f32.gmra.mxu0 %v377
    %v417 = vpop.f32.mrf.mxu0
    %v418 = vadd.f32 0.0, %v417
    %419 = vmatmul.f32.gmra.mxu0 %v380
    %v420 = vpop.f32.mrf.mxu0
    %v421 = vadd.f32 0.0, %v420
    %422 = vmatmul.f32.gmra.mxu0 %v383
    %v423 = vpop.f32.mrf.mxu0
    %v424 = vadd.f32 0.0, %v423
    %425 = vmatmul.f32.gmra.mxu0 %v386
    %v426 = vpop.f32.mrf.mxu0
    %v427 = vadd.f32 0.0, %v426
    %428 = vmatmul.f32.gmra.mxu0 %v389
    %v429 = vpop.f32.mrf.mxu0
    %v430 = vadd.f32 0.0, %v429
    %431 = vmatmul.f32.gmra.mxu0 %v392
    %v432 = vpop.f32.mrf.mxu0
    %v433 = vadd.f32 0.0, %v432
    %434 = vmatmul.f32.gmra.mxu0 %v395
    %v435 = vpop.f32.mrf.mxu0
    %v436 = vadd.f32 0.0, %v435
    %437 = vdwg.mxu0
    %v438 = vmul.f32 %v415, 2.828427
    %v439 = vmul.f32 %v418, 2.828427
    %v440 = vmul.f32 %v421, 2.828427
    %v441 = vmul.f32 %v424, 2.828427
    %v442 = vmul.f32 %v427, 2.828427
    %v443 = vmul.f32 %v430, 2.828427
    %v444 = vmul.f32 %v433, 2.828427
    %v445 = vmul.f32 %v436, 2.828427
    %s446 = scalar_lea.vmem [#allocation8], 64
    %447 = vst.msk [vmem:[%s446] sm:$0xff] %vm86, %v438
    %448 = vst.msk [vmem:[%s446 + $0x8] sm:$0xff] %vm86, %v439
    %449 = vst.msk [vmem:[%s446 + $0x10] sm:$0xff] %vm86, %v440
    %450 = vst.msk [vmem:[%s446 + $0x18] sm:$0xff] %vm86, %v441
    %451 = vst.msk [vmem:[%s446 + $0x20] sm:$0xff] %vm86, %v442
    %452 = vst.msk [vmem:[%s446 + $0x28] sm:$0xff] %vm86, %v443
    %453 = vst.msk [vmem:[%s446 + $0x30] sm:$0xff] %vm86, %v444
    %454 = vst.msk [vmem:[%s446 + $0x38] sm:$0xff] %vm86, %v445
    %s455 = scalar_lea.vmem [#allocation2], 128
    %v456 = vld [vmem:[%s455] sm:$0xff]
    %v457 = vld [vmem:[%s455 + $0x8] sm:$0xff]
    %v458 = vld [vmem:[%s455 + $0x10] sm:$0xff]
    %v459 = vld [vmem:[%s455 + $0x18] sm:$0xff]
    %v460 = vld [vmem:[%s455 + $0x20] sm:$0xff]
    %v461 = vld [vmem:[%s455 + $0x28] sm:$0xff]
    %v462 = vld [vmem:[%s455 + $0x30] sm:$0xff]
    %v463 = vld [vmem:[%s455 + $0x38] sm:$0xff]
    %s464 = scalar_lea.vmem [#allocation5], 128
    %v465 = vld [vmem:[%s464] sm:$0xff]
    %v466 = vld [vmem:[%s464 + $0x8] sm:$0xff]
    %v467 = vld [vmem:[%s464 + $0x10] sm:$0xff]
    %v468 = vld [vmem:[%s464 + $0x18] sm:$0xff]
    %v469 = vld [vmem:[%s464 + $0x20] sm:$0xff]
    %v470 = vld [vmem:[%s464 + $0x28] sm:$0xff]
    %v471 = vld [vmem:[%s464 + $0x30] sm:$0xff]
    %v472 = vld [vmem:[%s464 + $0x38] sm:$0xff]
    %s473 = scalar_lea.vmem [#allocation7], 128
    %v474 = vld [vmem:[%s473] sm:$0xff]
    %v475 = vld [vmem:[%s473 + $0x8] sm:$0xff]
    %v476 = vld [vmem:[%s473 + $0x10] sm:$0xff]
    %v477 = vld [vmem:[%s473 + $0x18] sm:$0xff]
    %v478 = vld [vmem:[%s473 + $0x20] sm:$0xff]
    %v479 = vld [vmem:[%s473 + $0x28] sm:$0xff]
    %v480 = vld [vmem:[%s473 + $0x30] sm:$0xff]
    %v481 = vld [vmem:[%s473 + $0x38] sm:$0xff]
    %v483 = vsel %vm86, %v456, 0
    %v486 = vsel %vm86, %v457, 0
    %v489 = vsel %vm86, %v458, 0
    %v492 = vsel %vm86, %v459, 0
    %v495 = vsel %vm86, %v460, 0
    %v498 = vsel %vm86, %v461, 0
    %v501 = vsel %vm86, %v462, 0
    %v504 = vsel %vm86, %v463, 0
    %v507 = vsel %vm86, %v465, 0
    %v510 = vsel %vm86, %v466, 0
    %v513 = vsel %vm86, %v467, 0
    %v516 = vsel %vm86, %v468, 0
    %v519 = vsel %vm86, %v469, 0
    %v522 = vsel %vm86, %v470, 0
    %v525 = vsel %vm86, %v471, 0
    %v528 = vsel %vm86, %v472, 0
    %530 = vmatpush.xpose.msra.mxu0 0.0
    %531 = vmatpush.xpose.msra.mxu0 0.0
    %532 = vmatpush.xpose.msra.mxu0 0.0
    %533 = vmatpush.xpose.msra.mxu0 0.0
    %534 = vmatpush.xpose.msra.mxu0 0.0
    %535 = vmatpush.xpose.msra.mxu0 0.0
    %536 = vmatpush.xpose.msra.mxu0 0.0
    %537 = vmatpush.xpose.msra.mxu0 0.0
    %538 = vmatpush.xpose.msra.mxu0 %v528
    %539 = vmatpush.xpose.msra.mxu0 %v525
    %540 = vmatpush.xpose.msra.mxu0 %v522
    %541 = vmatpush.xpose.msra.mxu0 %v519
    %542 = vmatpush.xpose.msra.mxu0 %v516
    %543 = vmatpush.xpose.msra.mxu0 %v513
    %544 = vmatpush.xpose.msra.mxu0 %v510
    %545 = vmatpush.xpose.msra.mxu0 %v507
    %546 = vmatmul.f32.gmra.mxu0 %v483
    %v547 = vpop.f32.mrf.mxu0
    %v548 = vadd.f32 0.0, %v547
    %549 = vmatmul.f32.gmra.mxu0 %v486
    %v550 = vpop.f32.mrf.mxu0
    %v551 = vadd.f32 0.0, %v550
    %552 = vmatmul.f32.gmra.mxu0 %v489
    %v553 = vpop.f32.mrf.mxu0
    %v554 = vadd.f32 0.0, %v553
    %555 = vmatmul.f32.gmra.mxu0 %v492
    %v556 = vpop.f32.mrf.mxu0
    %v557 = vadd.f32 0.0, %v556
    %558 = vmatmul.f32.gmra.mxu0 %v495
    %v559 = vpop.f32.mrf.mxu0
    %v560 = vadd.f32 0.0, %v559
    %561 = vmatmul.f32.gmra.mxu0 %v498
    %v562 = vpop.f32.mrf.mxu0
    %v563 = vadd.f32 0.0, %v562
    %564 = vmatmul.f32.gmra.mxu0 %v501
    %v565 = vpop.f32.mrf.mxu0
    %v566 = vadd.f32 0.0, %v565
    %567 = vmatmul.f32.gmra.mxu0 %v504
    %v568 = vpop.f32.mrf.mxu0
    %v569 = vadd.f32 0.0, %v568
    %570 = vdwg.mxu0
    %v572 = vsel %vm86, %v548, 0
    %v575 = vsel %vm86, %v551, 0
    %v578 = vsel %vm86, %v554, 0
    %v581 = vsel %vm86, %v557, 0
    %v584 = vsel %vm86, %v560, 0
    %v587 = vsel %vm86, %v563, 0
    %v590 = vsel %vm86, %v566, 0
    %v593 = vsel %vm86, %v569, 0
    %595 = vmatpush.msra.mxu0 0.0
    %596 = vmatpush.msra.mxu0 0.0
    %597 = vmatpush.msra.mxu0 0.0
    %598 = vmatpush.msra.mxu0 0.0
    %599 = vmatpush.msra.mxu0 0.0
    %600 = vmatpush.msra.mxu0 0.0
    %601 = vmatpush.msra.mxu0 0.0
    %602 = vmatpush.msra.mxu0 0.0
    %603 = vmatpush.msra.mxu0 %v481
    %604 = vmatpush.msra.mxu0 %v480
    %605 = vmatpush.msra.mxu0 %v479
    %606 = vmatpush.msra.mxu0 %v478
    %607 = vmatpush.msra.mxu0 %v477
    %608 = vmatpush.msra.mxu0 %v476
    %609 = vmatpush.msra.mxu0 %v475
    %610 = vmatpush.msra.mxu0 %v474
    %611 = vmatmul.f32.gmra.mxu0 %v572
    %v612 = vpop.f32.mrf.mxu0
    %v613 = vadd.f32 0.0, %v612
    %614 = vmatmul.f32.gmra.mxu0 %v575
    %v615 = vpop.f32.mrf.mxu0
    %v616 = vadd.f32 0.0, %v615
    %617 = vmatmul.f32.gmra.mxu0 %v578
    %v618 = vpop.f32.mrf.mxu0
    %v619 = vadd.f32 0.0, %v618
    %620 = vmatmul.f32.gmra.mxu0 %v581
    %v621 = vpop.f32.mrf.mxu0
    %v622 = vadd.f32 0.0, %v621
    %623 = vmatmul.f32.gmra.mxu0 %v584
    %v624 = vpop.f32.mrf.mxu0
    %v625 = vadd.f32 0.0, %v624
    %626 = vmatmul.f32.gmra.mxu0 %v587
    %v627 = vpop.f32.mrf.mxu0
    %v628 = vadd.f32 0.0, %v627
    %629 = vmatmul.f32.gmra.mxu0 %v590
    %v630 = vpop.f32.mrf.mxu0
    %v631 = vadd.f32 0.0, %v630
    %632 = vmatmul.f32.gmra.mxu0 %v593
    %v633 = vpop.f32.mrf.mxu0
    %v634 = vadd.f32 0.0, %v633
    %635 = vdwg.mxu0
    %v636 = vmul.f32 %v613, 2.828427
    %v637 = vmul.f32 %v616, 2.828427
    %v638 = vmul.f32 %v619, 2.828427
    %v639 = vmul.f32 %v622, 2.828427
    %v640 = vmul.f32 %v625, 2.828427
    %v641 = vmul.f32 %v628, 2.828427
    %v642 = vmul.f32 %v631, 2.828427
    %v643 = vmul.f32 %v634, 2.828427
    %s644 = scalar_lea.vmem [#allocation8], 128
    %645 = vst.msk [vmem:[%s644] sm:$0xff] %vm86, %v636
    %646 = vst.msk [vmem:[%s644 + $0x8] sm:$0xff] %vm86, %v637
    %647 = vst.msk [vmem:[%s644 + $0x10] sm:$0xff] %vm86, %v638
    %648 = vst.msk [vmem:[%s644 + $0x18] sm:$0xff] %vm86, %v639
    %649 = vst.msk [vmem:[%s644 + $0x20] sm:$0xff] %vm86, %v640
    %650 = vst.msk [vmem:[%s644 + $0x28] sm:$0xff] %vm86, %v641
    %651 = vst.msk [vmem:[%s644 + $0x30] sm:$0xff] %vm86, %v642
    %652 = vst.msk [vmem:[%s644 + $0x38] sm:$0xff] %vm86, %v643
    // Predicated region
    $region26: #{tpu_custom_call.1} parent=1 // pred_check
      _
    $region27: #{tpu_custom_call.1} parent=1 // pred_check_branch
      %654 = sbr.rel (0) target = $region29
    $region28: #{tpu_custom_call.1} parent=1 // pred_region
      %656 = vsyncadd [#allocation4], 0
      %s657 = sshll.u32 [#allocation8], 4
      %s658 = int_to_ptr.vmem [resolvable:$true] %s657
      %s659 = sshll.u32 %s3, 4
      %s660 = int_to_ptr.hbm [resolvable:$true] %s659
      %665 = dma.vmem_to_hbm [thread:$0]  %s658, 3072, %s660, [#allocation4], 128, 128, 8
    $region29: #{tpu_custom_call.1} parent=1 // pred_fallthru
      _
    // Predicated region
    $region30: #{tpu_custom_call.1} parent=1 // pred_check
      _
    $region31: #{tpu_custom_call.1} parent=1 // pred_check_branch
      %667 = sbr.rel (0) target = $region33
    $region32: #{tpu_custom_call.1} parent=1 // pred_region
      %669 = dma.done [#allocation4], 3072
    $region33: #{tpu_custom_call.1} parent=1 // pred_fallthru
      _
    %670 = vsyncpa [#allocation3], 1
    %671 = vsyncpa [#allocation6], 1
    %672 = vsyncpa [#allocation4], 1

</llo_original>
